<compile_context>
chip_gen: v6e
topology: v6e:2x2x1
jax: 0.10.0
libtpu: 0.0.40
codegen_flags: <defaults>
</compile_context>

<pallas_src>
import jax
import jax.numpy as jnp
from jax.experimental import pallas as pl
from jax.experimental.pallas import tpu as pltpu


def mlp_logsoftmax_kernel(xT_ref, w1_ref, b1_ref, w2_ref, b2_ref, o_ref):
    """Fused forward pass on one batch tile (transposed layout).

    xT_ref : [F, TILE_B]  (batch on lanes, compute dtype)
    w1_ref : [H, F]       (torch linear1.weight, used as-is: W1 @ x^T)
    b1_ref : [H, 1]       f32
    w2_ref : [C, H]       (torch linear2.weight, used as-is: W2 @ h)
    b2_ref : [C, 1]       f32
    o_ref  : [C, TILE_B]  log-probabilities, classes on sublanes
    """
    xT = xT_ref[...]

    # linear1: W1 @ x^T + b1   (MXU, f32 accumulation) -> [H, TILE_B]
    h = jnp.dot(w1_ref[...], xT, preferred_element_type=jnp.float32) + b1_ref[...]

    # sigmoid as a single EUP op (exact): sigmoid(h) = 0.5 * tanh(0.5*h) + 0.5
    s = 0.5 * jnp.tanh(0.5 * h) + 0.5

    # linear2: W2 @ s + b2 -> [C, TILE_B]
    logits = (jnp.dot(w2_ref[...], s.astype(w2_ref.dtype),
                      preferred_element_type=jnp.float32)
              + b2_ref[...])

    # log_softmax over classes (sublane axis).  One vreg-wide exp (single EUP
    # push per 128 batch) and XLU sublane max/sum, which are otherwise idle.
    m = jnp.max(logits, axis=0, keepdims=True)            # [1, TILE_B]
    z = logits - m
    ez = jnp.exp(z)                                        # one exp on [C, TILE_B]
    denom = jnp.sum(ez, axis=0, keepdims=True)             # [1, TILE_B]
    o_ref[...] = z - jnp.log(denom)


def _round_up(v, m):
    return ((v + m - 1) // m) * m


def _effective_tile(batch, tile_b):
    """Pick a lane-tile: multiple of 128, capped at the batch extent, and with
    >= 2 grid steps when the batch spans more than one lane-tile (so the
    "parallel" batch axis can be sharded across both v7x TensorCores)."""
    b128 = _round_up(batch, 128)
    t = min(tile_b, b128)
    if t == b128 and batch > 128:
        t = _round_up(pl.cdiv(batch, 2), 128)
    return max(t, 128)


def multiclass_net_forward_tb(xT, w1, b1, w2, b2, *, tile_b=4096,
                              compute_dtype=jnp.bfloat16):
    """Transposed-layout entry point (no extra HBM passes around the kernel).

    xT : [NUM_FEATURES, B]   (batch on the fast axis)
    w1 : [HIDDEN, NUM_FEATURES], b1: [HIDDEN]
    w2 : [NUM_CLASSES, HIDDEN],  b2: [NUM_CLASSES]
    Returns [NUM_CLASSES, B] log-probabilities.
    """
    F, B = xT.shape
    H = w1.shape[0]
    C = w2.shape[0]

    t = _effective_tile(B, tile_b)
    grid = (pl.cdiv(B, t),)

    xc = xT.astype(compute_dtype)                          # [F, B]
    w1c = w1.astype(compute_dtype)                         # [H, F]
    w2c = w2.astype(compute_dtype)                         # [C, H]
    b1c = b1.reshape(H, 1).astype(jnp.float32)             # [H, 1]
    b2c = b2.reshape(C, 1).astype(jnp.float32)             # [C, 1]

    itemsize = jnp.dtype(compute_dtype).itemsize
    cost = pl.CostEstimate(
        flops=2 * B * (F * H + H * C),
        # tanh (H) + exp over classes (C) + log (1) per sample
        transcendentals=B * (H + C + 1),
        bytes_accessed=(xc.size * itemsize
                        + w1c.size * itemsize + w2c.size * itemsize
                        + b1c.size * 4 + b2c.size * 4
                        + C * B * 4),
    )

    outT = pl.pallas_call(
        mlp_logsoftmax_kernel,
        out_shape=jax.ShapeDtypeStruct((C, B), jnp.float32),
        grid_spec=pltpu.PrefetchScalarGridSpec(
            num_scalar_prefetch=0,
            grid=grid,
            in_specs=[
                pl.BlockSpec((F, t), lambda i: (0, i)),    # x tile (lane-dense)
                pl.BlockSpec((H, F), lambda i: (0, 0)),    # W1 resident
                pl.BlockSpec((H, 1), lambda i: (0, 0)),    # b1 resident
                pl.BlockSpec((C, H), lambda i: (0, 0)),    # W2 resident
                pl.BlockSpec((C, 1), lambda i: (0, 0)),    # b2 resident
            ],
            out_specs=pl.BlockSpec((C, t), lambda i: (0, i)),
        ),
        compiler_params=pltpu.CompilerParams(
            dimension_semantics=("parallel",),             # v7x: 2 TCs share batch
        ),
        cost_estimate=cost,
    )(xc, w1c, b1c, w2c, b2c)

    return outT


def multiclass_net_forward(x, w1, b1, w2, b2, *, tile_b=4096,
                           compute_dtype=jnp.bfloat16):
    """PyTorch-layout wrapper: x [B, NUM_FEATURES] -> [B, NUM_CLASSES] log-probs.

    The transposes here are layout glue for torch compatibility; callers that
    can hold activations batch-on-lanes should use multiclass_net_forward_tb
    directly and skip both HBM passes.
    """
    outT = multiclass_net_forward_tb(x.T, w1, b1, w2, b2,
                                     tile_b=tile_b, compute_dtype=compute_dtype)
    return outT.T


def _reference_forward(x, w1, b1, w2, b2):
    h = jax.nn.sigmoid(x @ w1.T + b1)
    logits = h @ w2.T + b2
    return jax.nn.log_softmax(logits, axis=1)


if __name__ == "__main__":
    # Iris-like sizes: 4 features, 3 classes; hidden=32, batch=8.
    # (At these toy sizes the call is fixed overhead; the tiling/layout above
    #  is what makes the kernel scale when B grows into the thousands.)
    NUM_FEATURES = 4
    NUM_CLASSES = 3
    HIDDEN_FEATURES = 32
    BATCH = 8

    key = jax.random.PRNGKey(0)
    kx, k1, k2, k3, k4 = jax.random.split(key, 5)

    x = jax.random.normal(kx, (BATCH, NUM_FEATURES), dtype=jnp.float32)

    # Deterministic parameter init (uniform, similar scale to torch default).
    bound1 = 1.0 / (NUM_FEATURES ** 0.5)
    bound2 = 1.0 / (HIDDEN_FEATURES ** 0.5)
    w1 = jax.random.uniform(k1, (HIDDEN_FEATURES, NUM_FEATURES),
                            minval=-bound1, maxval=bound1, dtype=jnp.float32)
    b1 = jax.random.uniform(k2, (HIDDEN_FEATURES,),
                            minval=-bound1, maxval=bound1, dtype=jnp.float32)
    w2 = jax.random.uniform(k3, (NUM_CLASSES, HIDDEN_FEATURES),
                            minval=-bound2, maxval=bound2, dtype=jnp.float32)
    b2 = jax.random.uniform(k4, (NUM_CLASSES,),
                            minval=-bound2, maxval=bound2, dtype=jnp.float32)

    ref = _reference_forward(x, w1, b1, w2, b2)

    # Default path: bf16 matmul operands, f32 accumulation / elementwise math.
    out_bf16 = multiclass_net_forward(x, w1, b1, w2, b2)
    out_bf16 = jax.block_until_ready(out_bf16)
    assert out_bf16.shape == (BATCH, NUM_CLASSES)
    assert jnp.allclose(out_bf16, ref, atol=2e-2, rtol=2e-2), \
        "bf16-path mismatch vs JAX reference"
    assert jnp.allclose(jnp.sum(jnp.exp(out_bf16), axis=1), 1.0, atol=1e-2)

    # Full-precision path: should match the reference tightly (exact sigmoid,
    # no approximate reciprocal anywhere).
    out_f32 = multiclass_net_forward(x, w1, b1, w2, b2,
                                     compute_dtype=jnp.float32)
    out_f32 = jax.block_until_ready(out_f32)
    assert out_f32.shape == (BATCH, NUM_CLASSES)
    assert jnp.allclose(out_f32, ref, atol=1e-4, rtol=1e-4), \
        "f32-path mismatch vs JAX reference"
    assert jnp.allclose(jnp.sum(jnp.exp(out_f32), axis=1), 1.0, atol=1e-4)

    print("KERNEL_OK")
</pallas_src>

<mosaic_0001>
module attributes {stable_mosaic.version = 11 : i64} {
  func.func @mlp_logsoftmax_kernel(%arg0: i32, %arg1: memref<4x128xbf16, #tpu.memory_space<vmem>>, %arg2: memref<32x4xbf16, #tpu.memory_space<vmem>>, %arg3: memref<32x1xf32, #tpu.memory_space<vmem>>, %arg4: memref<3x32xbf16, #tpu.memory_space<vmem>>, %arg5: memref<3x1xf32, #tpu.memory_space<vmem>>, %arg6: memref<3x128xf32, #tpu.memory_space<vmem>>) attributes {dimension_semantics = [#tpu.dimension_semantics<parallel>], iteration_bounds = array<i64: 1>, scalar_prefetch = 0 : i64, scratch_operands = 0 : i64, tpu.core_type = #tpu.core_type<tc>, window_params = [{transform_indices = @transform_0, window_bounds = array<i64: 4, 128>}, {pipeline_mode = #tpu.pipeline_mode<synchronous>, transform_indices = @transform_1, window_bounds = array<i64: 32, 4>}, {pipeline_mode = #tpu.pipeline_mode<synchronous>, transform_indices = @transform_2, window_bounds = array<i64: 32, 1>}, {pipeline_mode = #tpu.pipeline_mode<synchronous>, transform_indices = @transform_3, window_bounds = array<i64: 3, 32>}, {pipeline_mode = #tpu.pipeline_mode<synchronous>, transform_indices = @transform_4, window_bounds = array<i64: 3, 1>}, {transform_indices = @transform_5, window_bounds = array<i64: 3, 128>}]} {
    %c0 = arith.constant 0 : index
    %c0_0 = arith.constant 0 : index
    %0 = vector.load %arg1[%c0, %c0_0] : memref<4x128xbf16, #tpu.memory_space<vmem>>, vector<4x128xbf16>
    %c0_1 = arith.constant 0 : index
    %c0_2 = arith.constant 0 : index
    %1 = vector.load %arg2[%c0_1, %c0_2] : memref<32x4xbf16, #tpu.memory_space<vmem>>, vector<32x4xbf16>
    %cst = arith.constant dense<0.000000e+00> : vector<32x128xf32>
    %2 = tpu.matmul %1, %0, %cst {dimension_numbers = #tpu.dot_dimension_numbers<[1], [0], [0], [1], [0, 0, 1, 1], [], []>} : vector<32x4xbf16>, vector<4x128xbf16>, vector<32x128xf32> -> vector<32x128xf32>
    %c0_3 = arith.constant 0 : index
    %c0_4 = arith.constant 0 : index
    %3 = vector.load %arg3[%c0_3, %c0_4] : memref<32x1xf32, #tpu.memory_space<vmem>>, vector<32x1xf32>
    %4 = vector.broadcast %3 : vector<32x1xf32> to vector<32x128xf32>
    %5 = arith.addf %2, %4 : vector<32x128xf32>
    %cst_5 = arith.constant 5.000000e-01 : f32
    %6 = vector.broadcast %cst_5 : f32 to vector<32x128xf32>
    %7 = arith.mulf %6, %5 : vector<32x128xf32>
    %8 = math.tanh %7 : vector<32x128xf32>
    %cst_6 = arith.constant 5.000000e-01 : f32
    %9 = vector.broadcast %cst_6 : f32 to vector<32x128xf32>
    %10 = arith.mulf %9, %8 : vector<32x128xf32>
    %cst_7 = arith.constant 5.000000e-01 : f32
    %11 = vector.broadcast %cst_7 : f32 to vector<32x128xf32>
    %12 = arith.addf %10, %11 : vector<32x128xf32>
    %c0_8 = arith.constant 0 : index
    %c0_9 = arith.constant 0 : index
    %13 = vector.load %arg4[%c0_8, %c0_9] : memref<3x32xbf16, #tpu.memory_space<vmem>>, vector<3x32xbf16>
    %14 = arith.truncf %12 : vector<32x128xf32> to vector<32x128xbf16>
    %cst_10 = arith.constant dense<0.000000e+00> : vector<3x128xf32>
    %15 = tpu.matmul %13, %14, %cst_10 {dimension_numbers = #tpu.dot_dimension_numbers<[1], [0], [0], [1], [0, 0, 1, 1], [], []>} : vector<3x32xbf16>, vector<32x128xbf16>, vector<3x128xf32> -> vector<3x128xf32>
    %c0_11 = arith.constant 0 : index
    %c0_12 = arith.constant 0 : index
    %16 = vector.load %arg5[%c0_11, %c0_12] : memref<3x1xf32, #tpu.memory_space<vmem>>, vector<3x1xf32>
    %17 = vector.broadcast %16 : vector<3x1xf32> to vector<3x128xf32>
    %18 = arith.addf %15, %17 : vector<3x128xf32>
    %cst_13 = arith.constant dense<0xFF800000> : vector<128xf32>
    %19 = vector.multi_reduction <maximumf>, %18, %cst_13 [0] : vector<3x128xf32> to vector<128xf32>
    %20 = vector.shape_cast %19 : vector<128xf32> to vector<1x128xf32>
    %21 = vector.broadcast %20 : vector<1x128xf32> to vector<3x128xf32>
    %22 = arith.subf %18, %21 : vector<3x128xf32>
    %23 = math.exp %22 : vector<3x128xf32>
    %cst_14 = arith.constant dense<0.000000e+00> : vector<128xf32>
    %24 = vector.multi_reduction <add>, %23, %cst_14 [0] : vector<3x128xf32> to vector<128xf32>
    %25 = vector.shape_cast %24 : vector<128xf32> to vector<1x128xf32>
    %26 = math.log %25 : vector<1x128xf32>
    %27 = vector.broadcast %26 : vector<1x128xf32> to vector<3x128xf32>
    %28 = arith.subf %22, %27 : vector<3x128xf32>
    %c0_15 = arith.constant 0 : index
    %c0_16 = arith.constant 0 : index
    %29 = vector.load %arg6[%c0_15, %c0_16] : memref<3x128xf32, #tpu.memory_space<vmem>>, vector<3x128xf32>
    tpu.vector_store %arg6[%c0_15, %c0_16], %28 {strides = array<i32>} : memref<3x128xf32, #tpu.memory_space<vmem>>, vector<3x128xf32>,
    return
  }
  func.func @transform_0(%arg0: i32) -> (i32, i32) {
    %c0_i32 = arith.constant 0 : i32
    %c0_i32_0 = arith.constant 0 : i32
    return %c0_i32, %arg0 : i32, i32
  }
  func.func @transform_1(%arg0: i32) -> (i32, i32) {
    %c0_i32 = arith.constant 0 : i32
    %c0_i32_0 = arith.constant 0 : i32
    %c0_i32_1 = arith.constant 0 : i32
    return %c0_i32, %c0_i32_0 : i32, i32
  }
  func.func @transform_2(%arg0: i32) -> (i32, i32) {
    %c0_i32 = arith.constant 0 : i32
    %c0_i32_0 = arith.constant 0 : i32
    %c0_i32_1 = arith.constant 0 : i32
    return %c0_i32, %c0_i32_0 : i32, i32
  }
  func.func @transform_3(%arg0: i32) -> (i32, i32) {
    %c0_i32 = arith.constant 0 : i32
    %c0_i32_0 = arith.constant 0 : i32
    %c0_i32_1 = arith.constant 0 : i32
    return %c0_i32, %c0_i32_0 : i32, i32
  }
  func.func @transform_4(%arg0: i32) -> (i32, i32) {
    %c0_i32 = arith.constant 0 : i32
    %c0_i32_0 = arith.constant 0 : i32
    %c0_i32_1 = arith.constant 0 : i32
    return %c0_i32, %c0_i32_0 : i32, i32
  }
  func.func @transform_5(%arg0: i32) -> (i32, i32) {
    %c0_i32 = arith.constant 0 : i32
    %c0_i32_0 = arith.constant 0 : i32
    return %c0_i32, %arg0 : i32, i32
  }
}

</mosaic_0001>

<llo_original>
// kernel: tpu_custom_call.1
$region0: #{tpu_custom_call.1}
  #allocation0 [shape = 'u32[]', space=smem, size = 0x4, offset = 0x4, fixed_abs, tag = 'smem constant byte address 0x4 - core index']
  #allocation1 [shape = 'u32[144,128]{1,0:T(1,128)}', space=vmem, size = 0x12000, scoped, tag = 'internal scratch']
  %s0 = inlined_call_operand.vmem [shape: bf16[4,8], index: 0, kind: input, shape index: {}]
  %s1 = inlined_call_operand.vmem [shape: bf16[32,4], index: 1, kind: input, shape index: {}]
  %s2 = inlined_call_operand.vmem [shape: f32[32,1], index: 2, kind: input, shape index: {}]
  %s3 = inlined_call_operand.vmem [shape: bf16[3,32], index: 3, kind: input, shape index: {}]
  %s4 = inlined_call_operand.vmem [shape: f32[3,1], index: 4, kind: input, shape index: {}]
  %s5 = inlined_call_operand.hbm [shape: f32[3,8], index: 5, kind: output, shape index: {}]
  %s6 = sld [smem:[#allocation0]]
  $region30: #{tpu_custom_call.1} parent=0
    _
  %s8 = ssub.s32 1, %s6
  %s9 = scalar_select 0, %s8, %s6
  $region1: #{tpu_custom_call.1} parent=0
    #allocation2 [shape = 'u8[2048]{0}', space=vmem, size = 0x800, scoped, tag = 'output window, operand 0, single buffered']
    #allocation3 [shape = 's32[1]{0}', space=sflag, size = 0x4, scoped, tag = 'scoped memory for tpu_custom_call.1']
    %10 = vsyncpa [#allocation3], 0
    // Predicated region
    $region2: #{tpu_custom_call.1} parent=1 // pred_check
      _
    $region3: #{tpu_custom_call.1} parent=1 // pred_check_branch
      %12 = sbr.rel (0) target = $region5
    $region4: #{tpu_custom_call.1} parent=1 // pred_region
      _
    $region5: #{tpu_custom_call.1} parent=1 // pred_fallthru
      _
    // Predicated region
    $region6: #{tpu_custom_call.1} parent=1 // pred_check
      _
    $region7: #{tpu_custom_call.1} parent=1 // pred_check_branch
      %14 = sbr.rel (0) target = $region9
    $region8: #{tpu_custom_call.1} parent=1 // pred_region
      _
    $region9: #{tpu_custom_call.1} parent=1 // pred_fallthru
      _
    // Predicated region
    $region10: #{tpu_custom_call.1} parent=1 // pred_check
      _
    $region11: #{tpu_custom_call.1} parent=1 // pred_check_branch
      %16 = sbr.rel (0) target = $region13
    $region12: #{tpu_custom_call.1} parent=1 // pred_region
      _
    $region13: #{tpu_custom_call.1} parent=1 // pred_fallthru
      _
    // Predicated region
    $region14: #{tpu_custom_call.1} parent=1 // pred_check
      _
    $region15: #{tpu_custom_call.1} parent=1 // pred_check_branch
      %18 = sbr.rel (0) target = $region17
    $region16: #{tpu_custom_call.1} parent=1 // pred_region
      _
    $region17: #{tpu_custom_call.1} parent=1 // pred_fallthru
      _
    // Predicated region
    $region18: #{tpu_custom_call.1} parent=1 // pred_check
      _
    $region19: #{tpu_custom_call.1} parent=1 // pred_check_branch
      %20 = sbr.rel (0) target = $region21
    $region20: #{tpu_custom_call.1} parent=1 // pred_region
      _
    $region21: #{tpu_custom_call.1} parent=1 // pred_fallthru
      _
    %v22 = vld [vmem:[%s0] sm:$0x3]
    %v23 = vld [vmem:[%s1] sm:$0xf]
    %v24 = vld [vmem:[%s1 + $0x4] sm:$0xf]
    %v25 = vld [vmem:[%s1 + $0x8] sm:$0xf]
    %v26 = vld [vmem:[%s1 + $0xc] sm:$0xf]
    %v27 = vld [vmem:[%s2] sm:$0xff]
    %v28 = vld [vmem:[%s2 + $0x8] sm:$0xff]
    %v29 = vld [vmem:[%s2 + $0x10] sm:$0xff]
    %v30 = vld [vmem:[%s2 + $0x18] sm:$0xff]
    %32 = vset.pattern.permute.xlu0 0
    %33 = vperm.xlu0 %32, %v27
    %v34 = vpop.permute.xlu0 %33
    %37 = vset.pattern.permute.xlu0 0
    %38 = vperm.xlu0 %37, %v28
    %v39 = vpop.permute.xlu0 %38
    %42 = vset.pattern.permute.xlu0 0
    %43 = vperm.xlu0 %42, %v29
    %v44 = vpop.permute.xlu0 %43
    %47 = vset.pattern.permute.xlu0 0
    %48 = vperm.xlu0 %47, %v30
    %v49 = vpop.permute.xlu0 %48
    %v55 = vunpack.c.l.b16 %v23
    %v56 = vunpack.c.l.b16 %v24
    %v57 = vunpack.c.l.b16 %v25
    %v58 = vunpack.c.l.b16 %v26
    %v59 = vpack.c.b16 %v56, %v55
    %v60 = vpack.c.b16 %v58, %v57
    %vm61 = vcmask 31744
    %v63 = vsel %vm61, %v59, 0
    %v66 = vsel %vm61, %v60, 0
    %vm68 = vcmask 1041408
    %v70 = vsel %vm68, %v22, 0
    %72 = vmatprep.subr.bf16.mxu0 0
    %73 = vmatpush1.bf16.msra.mxu0 0
    %74 = vmatprep.subr.bf16.mxu0 0
    %75 = vmatpush1.bf16.msra.mxu0 0
    %76 = vmatprep.subr.bf16.mxu0 0
    %77 = vmatpush1.bf16.msra.mxu0 0
    %78 = vmatprep.subr.bf16.mxu0 0
    %79 = vmatpush1.bf16.msra.mxu0 0
    %80 = vmatprep.subr.bf16.mxu0 0
    %81 = vmatpush1.bf16.msra.mxu0 0
    %82 = vmatprep.subr.bf16.mxu0 0
    %83 = vmatpush1.bf16.msra.mxu0 0
    %84 = vmatprep.subr.bf16.mxu0 0
    %85 = vmatpush1.bf16.msra.mxu0 0
    %86 = vmatprep.subr.bf16.mxu0 0
    %87 = vmatpush1.bf16.msra.mxu0 %v70
    %88 = vmatprep.subr.bf16.mxu0 0
    %89 = vmatpush2.bf16.msra.mxu0 0
    %90 = vmatprep.subr.bf16.mxu0 0
    %91 = vmatpush2.bf16.msra.mxu0 0
    %92 = vmatprep.subr.bf16.mxu0 0
    %93 = vmatpush2.bf16.msra.mxu0 0
    %94 = vmatprep.subr.bf16.mxu0 0
    %95 = vmatpush2.bf16.msra.mxu0 0
    %96 = vmatprep.subr.bf16.mxu0 0
    %97 = vmatpush2.bf16.msra.mxu0 0
    %98 = vmatprep.subr.bf16.mxu0 0
    %99 = vmatpush2.bf16.msra.mxu0 0
    %100 = vmatprep.subr.bf16.mxu0 0
    %101 = vmatpush2.bf16.msra.mxu0 0
    %102 = vmatprep.subr.bf16.mxu0 0
    %103 = vmatpush2.bf16.msra.mxu0 0
    %104 = vmatprep.mubr.bf16.mxu0 0
    %105 = vmatmul.mubr.bf16.gmra.mxu0 %v63
    %v106 = vpop.f32.mrf.mxu0
    %v107 = vadd.f32 %v34, %v106
    %v108 = vpop.f32.mrf.mxu0
    %v109 = vpop.f32.mrf.mxu0
    %v110 = vadd.f32 %v39, %v109
    %v111 = vpop.f32.mrf.mxu0
    %112 = vmatprep.mubr.bf16.mxu0 0
    %113 = vmatmul.mubr.bf16.gmra.mxu0 %v66
    %v114 = vpop.f32.mrf.mxu0
    %v115 = vadd.f32 %v44, %v114
    %v116 = vpop.f32.mrf.mxu0
    %v117 = vpop.f32.mrf.mxu0
    %v118 = vadd.f32 %v49, %v117
    %v119 = vpop.f32.mrf.mxu0
    %120 = vdwg.mxu0
    %v121 = vmul.f32 %v107, 0.5
    %v122 = vmul.f32 %v110, 0.5
    %v123 = vmul.f32 %v115, 0.5
    %v124 = vmul.f32 %v118, 0.5
    %v125 = vtanh.pop %v121
    %v126 = vtanh.pop %v122
    %v127 = vtanh.pop %v123
    %v128 = vtanh.pop %v124
    %v129 = vmul.f32 %v125, 0.5
    %v130 = vmul.f32 %v126, 0.5
    %v131 = vmul.f32 %v127, 0.5
    %v132 = vmul.f32 %v128, 0.5
    %v133 = vadd.f32 %v129, 0.5
    %v134 = vadd.f32 %v130, 0.5
    %v135 = vadd.f32 %v131, 0.5
    %v136 = vadd.f32 %v132, 0.5
    %v137 = vld [vmem:[%s3] sm:$0x3]
    %v138 = vpack.c.bf16 %v134, %v133
    %v139 = vpack.c.bf16 %v136, %v135
    %v140 = vld [vmem:[%s4] sm:$0x7]
    %142 = vset.pattern.permute.xlu0 0
    %143 = vperm.xlu0 %142, %v140
    %v144 = vpop.permute.xlu0 %143
    %vm146 = vcmask 261120
    %v148 = vsel %vm146, %v137, 0
    %150 = vmatprep.subr.bf16.mxu0 0
    %151 = vmatpush1.bf16.msra.mxu0 0
    %152 = vmatprep.subr.bf16.mxu0 0
    %153 = vmatpush1.bf16.msra.mxu0 0
    %154 = vmatprep.subr.bf16.mxu0 0
    %155 = vmatpush1.bf16.msra.mxu0 0
    %156 = vmatprep.subr.bf16.mxu0 0
    %157 = vmatpush1.bf16.msra.mxu0 0
    %158 = vmatprep.subr.bf16.mxu0 0
    %159 = vmatpush1.bf16.msra.mxu0 0
    %160 = vmatprep.subr.bf16.mxu0 0
    %161 = vmatpush1.bf16.msra.mxu0 0
    %162 = vmatprep.subr.bf16.mxu0 0
    %163 = vmatpush1.bf16.msra.mxu0 %v139
    %164 = vmatprep.subr.bf16.mxu0 0
    %165 = vmatpush1.bf16.msra.mxu0 %v138
    %166 = vmatprep.subr.bf16.mxu0 0
    %167 = vmatpush2.bf16.msra.mxu0 0
    %168 = vmatprep.subr.bf16.mxu0 0
    %169 = vmatpush2.bf16.msra.mxu0 0
    %170 = vmatprep.subr.bf16.mxu0 0
    %171 = vmatpush2.bf16.msra.mxu0 0
    %172 = vmatprep.subr.bf16.mxu0 0
    %173 = vmatpush2.bf16.msra.mxu0 0
    %174 = vmatprep.subr.bf16.mxu0 0
    %175 = vmatpush2.bf16.msra.mxu0 0
    %176 = vmatprep.subr.bf16.mxu0 0
    %177 = vmatpush2.bf16.msra.mxu0 0
    %178 = vmatprep.subr.bf16.mxu0 0
    %179 = vmatpush2.bf16.msra.mxu0 0
    %180 = vmatprep.subr.bf16.mxu0 0
    %181 = vmatpush2.bf16.msra.mxu0 0
    %182 = vmatprep.mubr.bf16.mxu0 0
    %183 = vmatmul.mubr.bf16.gmra.mxu0 %v148
    %v184 = vpop.f32.mrf.mxu0
    %v185 = vadd.f32 %v144, %v184
    %v186 = vpop.f32.mrf.mxu0
    %v187 = vpop.f32.mrf.mxu0
    %v188 = vpop.f32.mrf.mxu0
    %189 = vdwg.mxu0
    %vm190 = vcmask 1042432
    %v191 = vsel %vm190, %v185, -inf
    %v192 = vrot.slane %v191, 4
    %v193 = vmax.f32 %v191, %v192
    %v194 = vrot.slane %v193, 2
    %v195 = vmax.f32 %v193, %v194
    %v196 = vrot.slane %v195, 1
    %v197 = vmax.f32 %v195, %v196
    %v198 = vsub.f32 %v185, %v197
    %v199 = vmul.f32 %v198, 1.442695
    %v200 = vpow.pop %v199
    %v201 = vsel %vm190, %v200, 0.0
    %v202 = vrot.slane %v201, 4
    %v203 = vadd.f32 %v201, %v202
    %v204 = vrot.slane %v203, 2
    %v205 = vadd.f32 %v203, %v204
    %v206 = vrot.slane %v205, 1
    %v207 = vadd.f32 %v205, %v206
    %v208 = vlog2.pop %v207
    %v209 = vmul.f32 %v208, 0.6931472
    %v210 = vsub.f32 %v198, %v209
    %211 = vst [vmem:[#allocation2] sm:$0x7] %v210
    // Predicated region
    $region22: #{tpu_custom_call.1} parent=1 // pred_check
      _
    $region23: #{tpu_custom_call.1} parent=1 // pred_check_branch
      %213 = sbr.rel (0) target = $region25
    $region24: #{tpu_custom_call.1} parent=1 // pred_region
      %s215 = ssub.s32 64, 64
      %216 = vsyncadd [#allocation3], %s215
      %s218 = sshll.u32 [#allocation2], 4
      %s219 = int_to_ptr.vmem [resolvable:$true] %s218
      %221 = dma.vmem_to_hbm [thread:$0]  %s219, 64, %s5, [#allocation3]
    $region25: #{tpu_custom_call.1} parent=1 // pred_fallthru
      _
    // Predicated region
    $region26: #{tpu_custom_call.1} parent=1 // pred_check
      _
    $region27: #{tpu_custom_call.1} parent=1 // pred_check_branch
      %223 = sbr.rel (0) target = $region29
    $region28: #{tpu_custom_call.1} parent=1 // pred_region
      %224 = dma.done [#allocation3], 64
    $region29: #{tpu_custom_call.1} parent=1 // pred_fallthru
      _
    %225 = vsyncpa [#allocation3], 1

</llo_original>
